<compile_context>
chip_gen: v7x
topology: tpu7x:2x2x1
jax: 0.10.0
libtpu: 0.0.40
codegen_flags: <defaults>
</compile_context>

<pallas_src>
import functools

import jax
import jax.numpy as jnp
from jax.experimental import pallas as pl
from jax.experimental.pallas import tpu as pltpu

TEMPERATURE = 0.07
_EPS = 1e-12           # torch F.normalize default eps
_EPS2 = _EPS * _EPS    # used as rsqrt(sum_sq + eps^2)


def _round_up(x, m):
    return (x + m - 1) // m * m


def _memcon_block_kernel(sq_ref, mq_ref, out_ref, cnorm_ref, *, batch,
                         batch_padded, block_rows, inv_temp, mm_dtype):
    """One grid step: anchor rows [i*block_rows, (i+1)*block_rows)."""
    i = pl.program_id(0)
    row0 = pl.multiple_of(i * block_rows, block_rows)

    # Normalize the full contrast matrix exactly once (first grid step) into
    # a VMEM scratch that persists across the sequential row-block loop.
    @pl.when(i == 0)
    def _():
        mq = mq_ref[...].astype(jnp.float32)                  # (Bp, Dp)
        inv_mq = jax.lax.rsqrt(
            jnp.sum(mq * mq, axis=1, keepdims=True) + _EPS2)  # (Bp, 1)
        cnorm_ref[...] = (mq * inv_mq).astype(mm_dtype)

    # Row-wise L2 normalization of the anchor block via rsqrt (EUP slot);
    # 1/temperature folded into the per-row scale.
    sq = sq_ref[...].astype(jnp.float32)                      # (TM, Dp)
    inv_sq = jax.lax.rsqrt(
        jnp.sum(sq * sq, axis=1, keepdims=True) + _EPS2) * inv_temp
    anchor = sq * inv_sq                                      # includes 1/T

    # logits = anchor @ contrast.T — contract last dims of both operands so
    # no (D, B) transpose is materialized before the MXU.
    logits = jax.lax.dot_general(
        anchor.astype(mm_dtype), cnorm_ref[...],
        dimension_numbers=(((1,), (1,)), ((), ())),
        preferred_element_type=jnp.float32)                   # (TM, Bp)

    # Diagonal logits without an eye mask: elementwise against the
    # row-aligned, already-normalized contrast slice (O(TM*D)).
    c_diag = cnorm_ref[pl.ds(row0, block_rows), :].astype(jnp.float32)
    diag = jnp.sum(anchor * c_diag, axis=1, keepdims=True)    # (TM, 1)

    if batch_padded != batch:
        # Padded contrast columns must not contribute to the softmax denom.
        col = jax.lax.broadcasted_iota(jnp.int32, logits.shape, 1)
        logits = jnp.where(col < batch, logits, -jnp.inf)

    # Numerically stable log-sum-exp along dim 1.
    lmax = jnp.max(logits, axis=1, keepdims=True)
    log_den = jnp.log(jnp.sum(jnp.exp(logits - lmax), axis=1, keepdims=True))

    # -log_softmax(logits)[r, r] for every row of this block.
    row_loss = -(diag - lmax - log_den)                       # (TM, 1)

    if batch_padded != batch:
        row = jax.lax.broadcasted_iota(jnp.int32, row_loss.shape, 0)
        row_loss = jnp.where(row0 + row < batch, row_loss, 0.0)

    out_ref[...] = row_loss


def memcon_loss_trans(s_query, s_box_feat, mem_s_query, mem_bank,
                      temperature=TEMPERATURE, block_rows=256):
    """Pallas implementation of MemConLoss_trans.forward. Returns a scalar."""
    del s_box_feat, mem_bank                      # unused by the torch forward
    B, D = s_query.shape

    mm_dtype = jnp.bfloat16 if s_query.dtype == jnp.bfloat16 else jnp.float32
    # Sublane alignment: 8 rows for 32-bit data, 16 for packed 16-bit data so
    # the dynamic diagonal slice of the scratch stays tile-aligned.
    row_mult = 8 if jnp.dtype(s_query.dtype).itemsize == 4 else 16

    # Row-block size: biggest aligned block up to `block_rows` (typical
    # detection batches then run in a single grid step).
    tm = _round_up(min(block_rows, _round_up(B, row_mult)), row_mult)
    b_pad = _round_up(B, tm)
    d_pad = _round_up(D, 128)                     # lane-dense feature axis
    num_blocks = b_pad // tm

    def _pad(x):
        if x.shape == (b_pad, d_pad):
            return x
        return jnp.pad(x, ((0, b_pad - x.shape[0]), (0, d_pad - x.shape[1])))

    sq = _pad(s_query)
    mq = _pad(mem_s_query)

    kernel = functools.partial(
        _memcon_block_kernel, batch=B, batch_padded=b_pad, block_rows=tm,
        inv_temp=float(1.0 / temperature), mm_dtype=mm_dtype)

    per_row_loss = pl.pallas_call(
        kernel,
        out_shape=jax.ShapeDtypeStruct((b_pad, 1), jnp.float32),
        grid=(num_blocks,),
        in_specs=[
            pl.BlockSpec((tm, d_pad), lambda i: (i, 0)),     # anchor row block
            pl.BlockSpec((b_pad, d_pad), lambda i: (0, 0)),  # contrast, resident
        ],
        out_specs=pl.BlockSpec((tm, 1), lambda i: (i, 0)),
        scratch_shapes=[pltpu.VMEM((b_pad, d_pad), mm_dtype)],
        compiler_params=pltpu.CompilerParams(
            # "arbitrary": the normalized-contrast scratch is filled at step 0
            # and reused by later row blocks, so this axis must stay
            # sequential on a single core.
            dimension_semantics=("arbitrary",)),
    )(sq, mq)

    # Padded rows were zeroed in-kernel, so a plain sum / B is the mean.
    # The torch NaN guard (loss*0 then mean) cannot clear a NaN and is omitted.
    return jnp.sum(per_row_loss) / B


def _reference_loss(s_query, mem_s_query, temperature=TEMPERATURE):
    """Pure-JAX reference mirroring the PyTorch forward (for verification)."""
    anchor = s_query / jnp.maximum(
        jnp.linalg.norm(s_query, axis=1, keepdims=True), _EPS)
    contrast = mem_s_query / jnp.maximum(
        jnp.linalg.norm(mem_s_query, axis=1, keepdims=True), _EPS)
    logits = anchor @ contrast.T / temperature
    sm = logits - jnp.max(logits, axis=1, keepdims=True)
    log_prob = sm - jnp.log(jnp.sum(jnp.exp(sm), axis=1, keepdims=True))
    loss = -jnp.diagonal(log_prob)
    mean = jnp.mean(loss)
    return jnp.where(jnp.isnan(mean), jnp.mean(loss * 0.0), mean)


if __name__ == "__main__":
    key = jax.random.PRNGKey(0)
    k1, k2, k3, k4, k5, k6 = jax.random.split(key, 6)

    # Case 1: tiny aligned batch (typical small RoI group) — single grid step.
    B, D, M = 8, 32, 10
    s_query = jax.random.normal(k1, (B, D), dtype=jnp.float32)
    s_box_feat = jax.random.normal(k2, (B, D), dtype=jnp.float32)   # unused
    mem_s_query = jax.random.normal(k3, (B, D), dtype=jnp.float32)
    mem_bank = jax.random.normal(k4, (M, D), dtype=jnp.float32)     # unused

    loss1 = jax.block_until_ready(
        memcon_loss_trans(s_query, s_box_feat, mem_s_query, mem_bank))
    ref1 = _reference_loss(s_query, mem_s_query)
    assert jnp.allclose(loss1, ref1, rtol=1e-4, atol=1e-4), (loss1, ref1)

    # Case 2: unaligned batch with small block_rows — exercises the multi-step
    # row-block grid, the once-only contrast normalization in scratch, the
    # batch/feature padding, and the padded-row/column masking paths.
    B2, D2 = 200, 96
    s_query2 = jax.random.normal(k5, (B2, D2), dtype=jnp.float32)
    mem_s_query2 = jax.random.normal(k6, (B2, D2), dtype=jnp.float32)
    loss2 = jax.block_until_ready(
        memcon_loss_trans(s_query2, s_query2, mem_s_query2, mem_bank,
                          block_rows=64))
    ref2 = _reference_loss(s_query2, mem_s_query2)
    assert jnp.allclose(loss2, ref2, rtol=1e-4, atol=1e-4), (loss2, ref2)

    # Case 3: default block_rows — whole unaligned batch in one grid step.
    loss3 = jax.block_until_ready(
        memcon_loss_trans(s_query2, s_query2, mem_s_query2, mem_bank))
    assert jnp.allclose(loss3, ref2, rtol=1e-4, atol=1e-4), (loss3, ref2)

    print("KERNEL_OK")
</pallas_src>

<mosaic_0001>
module attributes {stable_mosaic.version = 11 : i64} {
  func.func @_memcon_block_kernel(%arg0: i32, %arg1: memref<8x128xf32, #tpu.memory_space<vmem>>, %arg2: memref<8x128xf32, #tpu.memory_space<vmem>>, %arg3: memref<8x1xf32, #tpu.memory_space<vmem>>, %arg4: memref<8x128xf32, #tpu.memory_space<vmem>>) attributes {dimension_semantics = [#tpu.dimension_semantics<arbitrary>], iteration_bounds = array<i64: 1>, scalar_prefetch = 0 : i64, scratch_operands = 1 : i64, tpu.core_type = #tpu.core_type<tc>, window_params = [{transform_indices = @transform_0, window_bounds = array<i64: 8, 128>}, {pipeline_mode = #tpu.pipeline_mode<synchronous>, transform_indices = @transform_1, window_bounds = array<i64: 8, 128>}, {transform_indices = @transform_2, window_bounds = array<i64: 8, 1>}]} {
    %c8_i32 = arith.constant 8 : i32
    %0 = arith.muli %arg0, %c8_i32 : i32
    %1 = tpu.assume_multiple %0, 8 : i32
    %c0_i32 = arith.constant 0 : i32
    %2 = arith.cmpi eq, %arg0, %c0_i32 : i32
    %3 = arith.extui %2 : i1 to i32
    %c0_i32_0 = arith.constant 0 : i32
    %4 = arith.cmpi ne, %3, %c0_i32_0 : i32
    scf.if %4 {
      %c0_14 = arith.constant 0 : index
      %c0_15 = arith.constant 0 : index
      %36 = vector.load %arg2[%c0_14, %c0_15] : memref<8x128xf32, #tpu.memory_space<vmem>>, vector<8x128xf32>
      %37 = arith.mulf %36, %36 : vector<8x128xf32>
      %cst_16 = arith.constant dense<0.000000e+00> : vector<8xf32>
      %38 = vector.multi_reduction <add>, %37, %cst_16 [1] : vector<8x128xf32> to vector<8xf32>
      %39 = vector.shape_cast %38 : vector<8xf32> to vector<8x1xf32>
      %cst_17 = arith.constant 1.000000e-24 : f32
      %40 = vector.broadcast %cst_17 : f32 to vector<8x1xf32>
      %41 = arith.addf %39, %40 : vector<8x1xf32>
      %42 = math.rsqrt %41 : vector<8x1xf32>
      %43 = vector.broadcast %42 : vector<8x1xf32> to vector<8x128xf32>
      %44 = arith.mulf %36, %43 : vector<8x128xf32>
      %c0_18 = arith.constant 0 : index
      %c0_19 = arith.constant 0 : index
      %45 = vector.load %arg4[%c0_18, %c0_19] : memref<8x128xf32, #tpu.memory_space<vmem>>, vector<8x128xf32>
      tpu.vector_store %arg4[%c0_18, %c0_19], %44 {strides = array<i32>} : memref<8x128xf32, #tpu.memory_space<vmem>>, vector<8x128xf32>,
    } else {
    }
    %c0 = arith.constant 0 : index
    %c0_1 = arith.constant 0 : index
    %5 = vector.load %arg1[%c0, %c0_1] : memref<8x128xf32, #tpu.memory_space<vmem>>, vector<8x128xf32>
    %6 = arith.mulf %5, %5 : vector<8x128xf32>
    %cst = arith.constant dense<0.000000e+00> : vector<8xf32>
    %7 = vector.multi_reduction <add>, %6, %cst [1] : vector<8x128xf32> to vector<8xf32>
    %8 = vector.shape_cast %7 : vector<8xf32> to vector<8x1xf32>
    %cst_2 = arith.constant 1.000000e-24 : f32
    %9 = vector.broadcast %cst_2 : f32 to vector<8x1xf32>
    %10 = arith.addf %8, %9 : vector<8x1xf32>
    %11 = math.rsqrt %10 : vector<8x1xf32>
    %cst_3 = arith.constant 14.2857141 : f32
    %12 = vector.broadcast %cst_3 : f32 to vector<8x1xf32>
    %13 = arith.mulf %11, %12 : vector<8x1xf32>
    %14 = vector.broadcast %13 : vector<8x1xf32> to vector<8x128xf32>
    %15 = arith.mulf %5, %14 : vector<8x128xf32>
    %c0_4 = arith.constant 0 : index
    %c0_5 = arith.constant 0 : index
    %16 = vector.load %arg4[%c0_4, %c0_5] : memref<8x128xf32, #tpu.memory_space<vmem>>, vector<8x128xf32>
    %cst_6 = arith.constant dense<0.000000e+00> : vector<8x8xf32>
    %17 = tpu.matmul %15, %16, %cst_6 {dimension_numbers = #tpu.dot_dimension_numbers<[1], [1], [0], [0], [0, 0, 1, 0], [], []>} : vector<8x128xf32>, vector<8x128xf32>, vector<8x8xf32> -> vector<8x8xf32>
    %18 = arith.index_cast %1 : i32 to index
    %c0_7 = arith.constant 0 : index
    %19 = vector.load %arg4[%18, %c0_7] : memref<8x128xf32, #tpu.memory_space<vmem>>, vector<8x128xf32>
    %20 = arith.mulf %15, %19 : vector<8x128xf32>
    %cst_8 = arith.constant dense<0.000000e+00> : vector<8xf32>
    %21 = vector.multi_reduction <add>, %20, %cst_8 [1] : vector<8x128xf32> to vector<8xf32>
    %22 = vector.shape_cast %21 : vector<8xf32> to vector<8x1xf32>
    %cst_9 = arith.constant dense<0xFF800000> : vector<8xf32>
    %23 = vector.multi_reduction <maximumf>, %17, %cst_9 [1] : vector<8x8xf32> to vector<8xf32>
    %24 = vector.shape_cast %23 : vector<8xf32> to vector<8x1xf32>
    %25 = vector.broadcast %24 : vector<8x1xf32> to vector<8x8xf32>
    %26 = arith.subf %17, %25 : vector<8x8xf32>
    %27 = math.exp %26 : vector<8x8xf32>
    %cst_10 = arith.constant dense<0.000000e+00> : vector<8xf32>
    %28 = vector.multi_reduction <add>, %27, %cst_10 [1] : vector<8x8xf32> to vector<8xf32>
    %29 = vector.shape_cast %28 : vector<8xf32> to vector<8x1xf32>
    %30 = math.log %29 : vector<8x1xf32>
    %31 = arith.subf %22, %24 : vector<8x1xf32>
    %32 = arith.subf %31, %30 : vector<8x1xf32>
    %cst_11 = arith.constant 0.000000e+00 : f32
    %33 = vector.broadcast %cst_11 : f32 to vector<8x1xf32>
    %34 = arith.subf %33, %32 : vector<8x1xf32>
    %c0_12 = arith.constant 0 : index
    %c0_13 = arith.constant 0 : index
    %35 = vector.load %arg3[%c0_12, %c0_13] : memref<8x1xf32, #tpu.memory_space<vmem>>, vector<8x1xf32>
    tpu.vector_store %arg3[%c0_12, %c0_13], %34 {strides = array<i32>} : memref<8x1xf32, #tpu.memory_space<vmem>>, vector<8x1xf32>,
    return
  }
  func.func @transform_0(%arg0: i32) -> (i32, i32) {
    %c0_i32 = arith.constant 0 : i32
    %c0_i32_0 = arith.constant 0 : i32
    return %arg0, %c0_i32 : i32, i32
  }
  func.func @transform_1(%arg0: i32) -> (i32, i32) {
    %c0_i32 = arith.constant 0 : i32
    %c0_i32_0 = arith.constant 0 : i32
    %c0_i32_1 = arith.constant 0 : i32
    return %c0_i32, %c0_i32_0 : i32, i32
  }
  func.func @transform_2(%arg0: i32) -> (i32, i32) {
    %c0_i32 = arith.constant 0 : i32
    %c0_i32_0 = arith.constant 0 : i32
    return %arg0, %c0_i32 : i32, i32
  }
}

</mosaic_0001>

<llo_original>
// kernel: tpu_custom_call.1
$region0: #{tpu_custom_call.1}
  #allocation0 [shape = 'u32[]', space=smem, size = 0x4, offset = 0x4, fixed_abs, tag = 'smem constant byte address 0x4 - core index']
  #allocation1 [shape = 'u32[144,128]{1,0:T(1,128)}', space=vmem, size = 0x12000, scoped, tag = 'internal scratch']
  #allocation2 [shape = 'f32[8,128]{1,0:T(8,128)}', space=vmem, size = 0x1000, scoped, tag = 'scratch operand']
  %s0 = inlined_call_operand.hbm [shape: f32[8,128], index: 0, kind: input, shape index: {}]
  %s1 = inlined_call_operand.hbm [shape: f32[8,128], index: 1, kind: input, shape index: {}]
  %s2 = inlined_call_operand.vmem [shape: f32[8,1], index: 2, kind: output, shape index: {}]
  %s3 = sld [smem:[#allocation0]]
  $region30: #{tpu_custom_call.1} parent=0
    _
  %s5 = ssub.s32 1, %s3
  %s6 = scalar_select 0, %s5, %s3
  $region1: #{tpu_custom_call.1} parent=0
    #allocation3 [shape = 'u8[4096]{0}', space=vmem, size = 0x1000, scoped, tag = 'input window, operand 0, single buffered']
    #allocation4 [shape = 's32[1]{0}', space=sflag, size = 0x4, scoped, tag = 'scoped memory for tpu_custom_call.1']
    #allocation5 [shape = 'u8[4096]{0}', space=vmem, size = 0x1000, scoped, tag = 'input window, operand 1, single buffered']
    #allocation6 [shape = 's32[1]{0}', space=sflag, size = 0x4, scoped, tag = 'scoped memory for tpu_custom_call.1']
    %7 = vsyncpa [#allocation4], 0
    %8 = vsyncpa [#allocation6], 0
    // Predicated region
    $region2: #{tpu_custom_call.1} parent=1 // pred_check
      _
    $region3: #{tpu_custom_call.1} parent=1 // pred_check_branch
      %10 = sbr.rel (0) target = $region5
    $region4: #{tpu_custom_call.1} parent=1 // pred_region
      %s12 = ssub.s32 128, 128
      %13 = vsyncadd [#allocation4], %s12
      %s15 = sshll.u32 [#allocation3], 4
      %s16 = int_to_ptr.vmem [resolvable:$true] %s15
      %18 = dma.hbm_to_vmem [thread:$0]  %s0, 128, %s16, [#allocation4]
    $region5: #{tpu_custom_call.1} parent=1 // pred_fallthru
      _
    // Predicated region
    $region6: #{tpu_custom_call.1} parent=1 // pred_check
      _
    $region7: #{tpu_custom_call.1} parent=1 // pred_check_branch
      %20 = sbr.rel (0) target = $region9
    $region8: #{tpu_custom_call.1} parent=1 // pred_region
      %s22 = ssub.s32 128, 128
      %23 = vsyncadd [#allocation6], %s22
      %s25 = sshll.u32 [#allocation5], 4
      %s26 = int_to_ptr.vmem [resolvable:$true] %s25
      %28 = dma.hbm_to_vmem [thread:$0]  %s1, 128, %s26, [#allocation6]
    $region9: #{tpu_custom_call.1} parent=1 // pred_fallthru
      _
    // Predicated region
    $region10: #{tpu_custom_call.1} parent=1 // pred_check
      _
    $region11: #{tpu_custom_call.1} parent=1 // pred_check_branch
      %30 = sbr.rel (0) target = $region13
    $region12: #{tpu_custom_call.1} parent=1 // pred_region
      %31 = dma.done [#allocation4], 128
    $region13: #{tpu_custom_call.1} parent=1 // pred_fallthru
      _
    // Predicated region
    $region14: #{tpu_custom_call.1} parent=1 // pred_check
      _
    $region15: #{tpu_custom_call.1} parent=1 // pred_check_branch
      %33 = sbr.rel (0) target = $region17
    $region16: #{tpu_custom_call.1} parent=1 // pred_region
      %34 = dma.done [#allocation6], 128
    $region17: #{tpu_custom_call.1} parent=1 // pred_fallthru
      _
    %s35 = smul.u32 0, 8
    %p36 = scmp.eq.s32.totalorder 0, 0
    // Predicated region
    $region18: #{tpu_custom_call.1} parent=1 // pred_check
      %p37 = pneg %p36
    $region19: #{tpu_custom_call.1} parent=1 // pred_check_branch
      %39 = sbr.rel (%p37) target = $region21
    $region20: #{tpu_custom_call.1} parent=1 // pred_region
      %v40 = vld [vmem:[#allocation5] sm:$0xff]
      %v41 = vmul.f32 %v40, %v40
      %42 = vadd.xlane.f32.xlu0 %v41
      %v43 = vpop.xlane.xlu0 %42
      %v44 = vadd.f32 %v43, 1e-24
      %v45 = vrsqrt.pop %v44
      %v46 = vmul.f32 %v40, %v45
      %47 = vst [vmem:[#allocation2] sm:$0xff] %v46
    $region21: #{tpu_custom_call.1} parent=1 // pred_fallthru
      _
    %v48 = vld [vmem:[#allocation3] sm:$0xff]
    %v49 = vmul.f32 %v48, %v48
    %50 = vadd.xlane.f32.xlu0 %v49
    %v51 = vpop.xlane.xlu0 %50
    %v52 = vadd.f32 %v51, 1e-24
    %v53 = vrsqrt.pop %v52
    %v54 = vmul.f32 %v53, 14.285714
    %v55 = vmul.f32 %v48, %v54
    %v56 = vld [vmem:[#allocation2] sm:$0xff]
    %57 = vmatprep.subr.mxu0 0.0
    %58 = vmatpush1.xpose.msra.mxu0 %v56
    %59 = vmatprep.subr.mxu0 0.0
    %60 = vmatpush1.xpose.msra.mxu0 0.0
    %61 = vmatprep.subr.mxu0 0.0
    %62 = vmatpush1.xpose.msra.mxu0 0.0
    %63 = vmatprep.subr.mxu0 0.0
    %64 = vmatpush1.xpose.msra.mxu0 0.0
    %65 = vmatprep.subr.mxu0 0.0
    %66 = vmatpush1.xpose.msra.mxu0 0.0
    %67 = vmatprep.subr.mxu0 0.0
    %68 = vmatpush1.xpose.msra.mxu0 0.0
    %69 = vmatprep.subr.mxu0 0.0
    %70 = vmatpush1.xpose.msra.mxu0 0.0
    %71 = vmatprep.subr.mxu0 0.0
    %72 = vmatpush1.xpose.msra.mxu0 0.0
    %73 = vmatprep.subr.mxu0 0.0
    %74 = vmatpush1.xpose.msra.mxu0 0.0
    %75 = vmatprep.subr.mxu0 0.0
    %76 = vmatpush1.xpose.msra.mxu0 0.0
    %77 = vmatprep.subr.mxu0 0.0
    %78 = vmatpush1.xpose.msra.mxu0 0.0
    %79 = vmatprep.subr.mxu0 0.0
    %80 = vmatpush1.xpose.msra.mxu0 0.0
    %81 = vmatprep.subr.mxu0 0.0
    %82 = vmatpush1.xpose.msra.mxu0 0.0
    %83 = vmatprep.subr.mxu0 0.0
    %84 = vmatpush1.xpose.msra.mxu0 0.0
    %85 = vmatprep.subr.mxu0 0.0
    %86 = vmatpush1.xpose.msra.mxu0 0.0
    %87 = vmatprep.subr.mxu0 0.0
    %88 = vmatpush1.xpose.msra.mxu0 0.0
    %89 = vmatprep.subr.mxu0 0.0
    %90 = vmatpush1.xpose.msra.mxu0 0.0
    %91 = vmatprep.subr.mxu0 0.0
    %92 = vmatpush1.xpose.msra.mxu0 0.0
    %93 = vmatprep.subr.mxu0 0.0
    %94 = vmatpush1.xpose.msra.mxu0 0.0
    %95 = vmatprep.subr.mxu0 0.0
    %96 = vmatpush1.xpose.msra.mxu0 0.0
    %97 = vmatprep.subr.mxu0 0.0
    %98 = vmatpush1.xpose.msra.mxu0 0.0
    %99 = vmatprep.subr.mxu0 0.0
    %100 = vmatpush1.xpose.msra.mxu0 0.0
    %101 = vmatprep.subr.mxu0 0.0
    %102 = vmatpush1.xpose.msra.mxu0 0.0
    %103 = vmatprep.subr.mxu0 0.0
    %104 = vmatpush1.xpose.msra.mxu0 0.0
    %105 = vmatprep.subr.mxu0 0.0
    %106 = vmatpush1.xpose.msra.mxu0 0.0
    %107 = vmatprep.subr.mxu0 0.0
    %108 = vmatpush1.xpose.msra.mxu0 0.0
    %109 = vmatprep.subr.mxu0 0.0
    %110 = vmatpush1.xpose.msra.mxu0 0.0
    %111 = vmatprep.subr.mxu0 0.0
    %112 = vmatpush1.xpose.msra.mxu0 0.0
    %113 = vmatprep.subr.mxu0 0.0
    %114 = vmatpush1.xpose.msra.mxu0 0.0
    %115 = vmatprep.subr.mxu0 0.0
    %116 = vmatpush1.xpose.msra.mxu0 0.0
    %117 = vmatprep.subr.mxu0 0.0
    %118 = vmatpush1.xpose.msra.mxu0 0.0
    %119 = vmatprep.subr.mxu0 0.0
    %120 = vmatpush1.xpose.msra.mxu0 0.0
    %121 = vmatprep.mubr.f32.mxu0 0.0
    %122 = vmatmul.mubr.f32.gmra.mrb[0].mxu0 %v55
    %v123 = vpop.f32.mrb[0].mxu0
    %v124 = vadd.f32 0.0, %v123
    %v125 = vpop.f32.mrb[0].mxu0
    %126 = vdwg.mxu0
    %s127 = scalar_lea.vmem [#allocation2], %s35
    %v128 = vld [vmem:[%s127] sm:$0xff]
    %v129 = vmul.f32 %v55, %v128
    %130 = vadd.xlane.f32.xlu0 %v129
    %v131 = vpop.xlane.xlu0 %130
    %vm132 = vcmask 64512
    %v133 = vsel %vm132, %v124, -inf
    %134 = vmax.xlane.f32.xlu0 %v133
    %v135 = vpop.xlane.xlu0 %134
    %v136 = vsub.f32 %v124, %v135
    %v137 = vmul.f32 %v136, 1.442695
    %v138 = vpow.pop %v137
    %v139 = vsel %vm132, %v138, 0.0
    %140 = vadd.xlane.f32.xlu0 %v139
    %v141 = vpop.xlane.xlu0 %140
    %v142 = vlog2.pop %v141
    %v143 = vmul.f32 %v142, 0.6931472
    %v144 = vsub.f32 %v131, %v135
    %v145 = vsub.f32 %v144, %v143
    %v146 = vsub.f32 0.0, %v145
    %vm147 = vcmask 7168
    %148 = vst.msk [vmem:[%s2] sm:$0xff] %vm147, %v146
    // Predicated region
    $region22: #{tpu_custom_call.1} parent=1 // pred_check
      _
    $region23: #{tpu_custom_call.1} parent=1 // pred_check_branch
      %150 = sbr.rel (0) target = $region25
    $region24: #{tpu_custom_call.1} parent=1 // pred_region
      _
    $region25: #{tpu_custom_call.1} parent=1 // pred_fallthru
      _
    // Predicated region
    $region26: #{tpu_custom_call.1} parent=1 // pred_check
      _
    $region27: #{tpu_custom_call.1} parent=1 // pred_check_branch
      %152 = sbr.rel (0) target = $region29
    $region28: #{tpu_custom_call.1} parent=1 // pred_region
      _
    $region29: #{tpu_custom_call.1} parent=1 // pred_fallthru
      _
    %153 = vsyncpa [#allocation4], 1
    %154 = vsyncpa [#allocation6], 1

</llo_original>
